<compile_context>
chip_gen: v7x
topology: tpu7x:2x2x1
jax: 0.10.0
libtpu: 0.0.40
codegen_flags: <defaults>
</compile_context>

<pallas_src>
import functools

import jax
import jax.numpy as jnp
import numpy as np
from jax.experimental import pallas as pl
from jax.experimental.pallas import tpu as pltpu


def _round_up(x, m):
    return (x + m - 1) // m * m


def _nbytes(*arrays):
    return int(sum(int(a.size) * a.dtype.itemsize for a in arrays))


# ----------------------------------------------------------------------------
# Pallas kernels
# ----------------------------------------------------------------------------
def linear_head_kernel(x_ref, wd_ref, bd_ref, wo_ref, bo_ref, o_ref):
    """Linear head: x -> dense -> tanh -> out_proj (hidden & labels lane-padded).

    x_ref : (bt, Hp)   wd_ref: (Hp, Hp)   bd_ref: (1, Hp) f32
    wo_ref: (Hp, Cp)   bo_ref: (1, Cp) f32               o_ref: (bt, Cp) f32
    """
    h = jnp.dot(x_ref[...], wd_ref[...], preferred_element_type=jnp.float32) + bd_ref[...]
    h = jnp.tanh(h)                                   # dropout == identity (eval mode)
    y = jnp.dot(h.astype(wo_ref.dtype), wo_ref[...],
                preferred_element_type=jnp.float32) + bo_ref[...]
    o_ref[...] = y.astype(o_ref.dtype)


def cnn_head_kernel(feat_ref, wc_ref, wo_ref, bo_ref, o_ref, acc_ref, *,
                    hidden, k_list, ocs):
    """Fused CNN head, bb batch rows per grid step.

    feat_ref: (bb, L, Hp)      lane-padded features
    wc_ref  : (k_max*Hp, OCp)  ALL conv branches fused into one weight: branch i owns
                               lanes [i*ocs, (i+1)*ocs); rows [j*Hp, j*Hp+H) hold tap j
                               (zero rows for taps j >= k_i)
    wo_ref  : (OCp, Cp)        out_proj weight (labels lane-padded)
    bo_ref  : (1, Cp) f32      out_proj bias
    o_ref   : (bb, Cp) f32
    acc_ref : (L_out, OCp) f32 VMEM scratch accumulator, L_out = L - min(k) + 1
    """
    bb, L, _ = feat_ref.shape
    l_out, ocp = acc_ref.shape
    k_max = max(k_list)

    # Per-(position, lane) validity: lane l belongs to branch i = l // ocs; position p
    # is a real conv output for branch i iff p <= L - k_i.  Positions past that miss
    # taps (treated as zero) and must not win the max-pool.  Padding lanes stay valid
    # (they hold exact zeros and map to zero rows of wo).
    pos = jax.lax.broadcasted_iota(jnp.int32, (l_out, ocp), 0)
    lane = jax.lax.broadcasted_iota(jnp.int32, (l_out, ocp), 1)
    vcnt = jnp.full((l_out, ocp), l_out, jnp.int32)
    for i, k in enumerate(k_list):
        in_branch = (lane >= i * ocs) & (lane < (i + 1) * ocs)
        vcnt = jnp.where(in_branch, L - k + 1, vcnt)
    valid = pos < vcnt

    pooled_rows = []
    for b in range(bb):                                   # static loop over batch rows
        acc_ref[...] = jnp.zeros_like(acc_ref)
        for j in range(k_max):                            # tap accumulation (no im2col copy)
            l_j = min(l_out, L - j)
            contrib = jnp.dot(feat_ref[b, j:j + l_j, :],
                              wc_ref[j * hidden:(j + 1) * hidden, :],
                              preferred_element_type=jnp.float32)
            if l_j == l_out:
                acc_ref[...] += contrib
            else:
                acc_ref[:l_j, :] += contrib
        masked = jnp.where(valid, acc_ref[...], jnp.float32(-1e30))
        pooled_rows.append(jnp.max(masked, axis=0, keepdims=True))    # (1, OCp)

    pooled = jnp.maximum(jnp.concatenate(pooled_rows, axis=0), 0.0)   # ReLU folded after pool
    y = jnp.dot(pooled.astype(wo_ref.dtype), wo_ref[...],
                preferred_element_type=jnp.float32) + bo_ref[...]     # one projection per step
    o_ref[...] = y.astype(o_ref.dtype)


# ----------------------------------------------------------------------------
# Wrapper
# ----------------------------------------------------------------------------
def esm_classification_head(features, params, head_type, *,
                            compute_dtype=jnp.bfloat16, batch_tile=256):
    """Forward pass of EsmClassificationHead (eval mode; dropout == identity).

    compute_dtype: dtype of the matmul operands (accumulation is always f32, biases
    stay f32).  Default bf16 (half HBM/VMEM traffic, native MXU rate on v5e/v6e/v7x);
    pass jnp.float32 for exact PyTorch-fp32 parity.
    """
    if head_type == "Linear":
        wd, bd, wo, bo = (params["dense_w"], params["dense_b"],
                          params["out_w"], params["out_b"])
        H = wd.shape[0]
        C = wo.shape[1]
        Hp = _round_up(H, 128)
        Cp = _round_up(C, 128)
        dtype = compute_dtype if compute_dtype is not None else features.dtype

        # CLS token sliced OUTSIDE the kernel: only (B, H) is DMA'd, not (B, L, H).
        x = features[:, 0, :].astype(dtype)
        B = x.shape[0]
        if Hp != H:
            x = jnp.pad(x, ((0, 0), (0, Hp - H)))          # lane-dense hidden

        # >= 2 grid steps once B >= 16 so the "parallel" axis can shard across v7x's
        # two TensorCores; batch_tile bounds per-step VMEM.
        bt = B if B < 16 else min(batch_tile, _round_up(pl.cdiv(B, 2), 8))
        Bp = _round_up(B, bt)
        if Bp != B:
            x = jnp.pad(x, ((0, Bp - B), (0, 0)))

        wd_p = jnp.zeros((Hp, Hp), dtype).at[:H, :H].set(wd.astype(dtype))
        bd_p = jnp.zeros((1, Hp), jnp.float32).at[:, :H].set(
            bd.astype(jnp.float32).reshape(1, H))
        wo_p = jnp.zeros((Hp, Cp), dtype).at[:H, :C].set(wo.astype(dtype))
        bo_p = jnp.zeros((1, Cp), jnp.float32).at[:, :C].set(
            bo.astype(jnp.float32).reshape(1, C))

        cost = pl.CostEstimate(
            flops=2 * Bp * Hp * Hp + 2 * Bp * Hp * Cp,
            transcendentals=Bp * Hp,                        # tanh
            bytes_accessed=_nbytes(x, wd_p, bd_p, wo_p, bo_p) + Bp * Cp * 4)

        # TODO(synk): on v7x with very large H, single-buffer the constant weight
        # specs (pipeline_mode=pl.Buffered(1)) to halve their VMEM footprint.
        out = pl.pallas_call(
            linear_head_kernel,
            out_shape=jax.ShapeDtypeStruct((Bp, Cp), jnp.float32),
            grid=(Bp // bt,),
            in_specs=[
                pl.BlockSpec((bt, Hp), lambda i: (i, 0)),
                pl.BlockSpec((Hp, Hp), lambda i: (0, 0)),
                pl.BlockSpec((1, Hp), lambda i: (0, 0)),
                pl.BlockSpec((Hp, Cp), lambda i: (0, 0)),
                pl.BlockSpec((1, Cp), lambda i: (0, 0)),
            ],
            out_specs=pl.BlockSpec((bt, Cp), lambda i: (i, 0)),
            compiler_params=pltpu.CompilerParams(
                dimension_semantics=("parallel",),
                vmem_limit_bytes=64 * 1024 * 1024),
            cost_estimate=cost,
        )(x, wd_p, bd_p, wo_p, bo_p)
        return out[:B, :C]

    elif head_type == "CNN":
        conv_ws = params["conv_ws"]                         # tuple of (k_i, H, ocs)
        wo, bo = params["out_w"], params["out_b"]
        B, L, H = features.shape
        k_list = tuple(int(w.shape[0]) for w in conv_ws)
        k_max, k_min = max(k_list), min(k_list)
        assert L >= k_max, f"sequence length {L} must be >= max kernel size {k_max}"
        ocs = conv_ws[0].shape[2]
        n = len(conv_ws)
        C = wo.shape[1]
        Hp = _round_up(H, 128)
        Cp = _round_up(C, 128)
        OCp = _round_up(n * ocs, 128)                       # all branches in one lane tile
        l_out = L - k_min + 1
        dtype = compute_dtype if compute_dtype is not None else features.dtype

        feat = features.astype(dtype)
        if Hp != H:
            feat = jnp.pad(feat, ((0, 0), (0, 0), (0, Hp - H)))

        # bb batch rows per grid step (amortizes per-step overhead; one dense
        # projection matmul per step instead of per row).
        bb = B if B <= 8 else 8
        Bp = _round_up(B, bb)
        if Bp != B:
            feat = jnp.pad(feat, ((0, Bp - B), (0, 0), (0, 0)))

        # Fused conv weight (k_max*Hp, OCp): branch i -> lanes [i*ocs, (i+1)*ocs),
        # tap j -> rows [j*Hp, j*Hp+H); taps j >= k_i stay zero.
        wc = jnp.zeros((k_max * Hp, OCp), dtype)
        for i, w in enumerate(conv_ws):
            for j in range(k_list[i]):
                wc = wc.at[j * Hp:j * Hp + H, i * ocs:(i + 1) * ocs].set(
                    w[j].astype(dtype))

        wo_p = jnp.zeros((OCp, Cp), dtype).at[:n * ocs, :C].set(wo.astype(dtype))
        bo_p = jnp.zeros((1, Cp), jnp.float32).at[:, :C].set(
            bo.astype(jnp.float32).reshape(1, C))

        cost = pl.CostEstimate(
            flops=2 * Bp * l_out * k_max * Hp * OCp + 2 * Bp * OCp * Cp,
            transcendentals=0,
            bytes_accessed=_nbytes(feat, wc, wo_p, bo_p) + Bp * Cp * 4)

        # TODO(synk): for very long L on v7x (64 MiB VMEM), add an "arbitrary" L grid
        # axis with a (k_max-1) halo and running per-lane max accumulators.
        out = pl.pallas_call(
            functools.partial(cnn_head_kernel, hidden=Hp, k_list=k_list, ocs=ocs),
            out_shape=jax.ShapeDtypeStruct((Bp, Cp), jnp.float32),
            grid=(Bp // bb,),
            in_specs=[
                pl.BlockSpec((bb, L, Hp), lambda b: (b, 0, 0)),
                pl.BlockSpec((k_max * Hp, OCp), lambda b: (0, 0)),
                pl.BlockSpec((OCp, Cp), lambda b: (0, 0)),
                pl.BlockSpec((1, Cp), lambda b: (0, 0)),
            ],
            out_specs=pl.BlockSpec((bb, Cp), lambda b: (b, 0)),
            scratch_shapes=[pltpu.VMEM((l_out, OCp), jnp.float32)],
            compiler_params=pltpu.CompilerParams(
                dimension_semantics=("parallel",),
                vmem_limit_bytes=64 * 1024 * 1024),
            cost_estimate=cost,
        )(feat, wc, wo_p, bo_p)
        return out[:B, :C]

    raise ValueError(f"unknown head_type {head_type}")


# ----------------------------------------------------------------------------
# Pure-JAX references (for runtime verification)
# ----------------------------------------------------------------------------
def linear_head_ref(features, params):
    x = features[:, 0, :]
    x = jnp.tanh(x @ params["dense_w"] + params["dense_b"][0])
    return x @ params["out_w"] + params["out_b"][0]


def cnn_head_ref(features, params):
    x = jnp.transpose(features, (0, 2, 1))                   # (B, H, L)  (PyTorch NCL)
    pooled = []
    for w in params["conv_ws"]:                              # w: (k, H, ocs)
        w_torch = jnp.transpose(w, (2, 1, 0))                # (ocs, H, k)
        conv = jax.lax.conv_general_dilated(
            x, w_torch, window_strides=(1,), padding="VALID",
            dimension_numbers=("NCH", "OIH", "NCH"))         # (B, ocs, L_out)
        pooled.append(jnp.max(jax.nn.relu(conv), axis=2))    # (B, ocs)
    cat = jnp.concatenate(pooled, axis=1)
    return cat @ params["out_w"] + params["out_b"][0]


# ----------------------------------------------------------------------------
# Main
# ----------------------------------------------------------------------------
if __name__ == "__main__":
    # config: hidden_size=32, num_labels=3, hidden_dropout_prob=0.0 (eval)
    B, L, H = 2, 8, 32
    num_labels = 3
    kernel_sizes = [2, 3, 5]
    ocs = 8

    key = jax.random.PRNGKey(0)
    keys = jax.random.split(key, 10)

    features = jax.random.normal(keys[0], (B, L, H), jnp.float32)

    linear_params = {
        "dense_w": 0.1 * jax.random.normal(keys[1], (H, H), jnp.float32),
        "dense_b": 0.1 * jax.random.normal(keys[2], (1, H), jnp.float32),
        "out_w": 0.1 * jax.random.normal(keys[3], (H, num_labels), jnp.float32),
        "out_b": 0.1 * jax.random.normal(keys[4], (1, num_labels), jnp.float32),
    }

    conv_ws = tuple(
        0.1 * jax.random.normal(keys[5 + i], (k, H, ocs), jnp.float32)
        for i, k in enumerate(kernel_sizes)
    )
    cnn_params = {
        "conv_ws": conv_ws,
        "out_w": 0.1 * jax.random.normal(keys[8], (ocs * len(kernel_sizes), num_labels),
                                         jnp.float32),
        "out_b": 0.1 * jax.random.normal(keys[9], (1, num_labels), jnp.float32),
    }

    ref_lin = linear_head_ref(features, linear_params)
    ref_cnn = cnn_head_ref(features, cnn_params)

    # ---- float32 parity path (matches PyTorch fp32 semantics) ----
    out_lin_f32 = jax.block_until_ready(
        esm_classification_head(features, linear_params, "Linear",
                                compute_dtype=jnp.float32))
    np.testing.assert_allclose(np.asarray(out_lin_f32), np.asarray(ref_lin),
                               rtol=1e-4, atol=1e-4)

    out_cnn_f32 = jax.block_until_ready(
        esm_classification_head(features, cnn_params, "CNN",
                                compute_dtype=jnp.float32))
    np.testing.assert_allclose(np.asarray(out_cnn_f32), np.asarray(ref_cnn),
                               rtol=1e-4, atol=1e-4)

    # ---- default bf16 perf path (f32 accumulation; loosened tolerance) ----
    out_lin_bf = jax.block_until_ready(
        esm_classification_head(features, linear_params, "Linear"))
    np.testing.assert_allclose(np.asarray(out_lin_bf), np.asarray(ref_lin),
                               rtol=5e-2, atol=5e-2)

    out_cnn_bf = jax.block_until_ready(
        esm_classification_head(features, cnn_params, "CNN"))
    np.testing.assert_allclose(np.asarray(out_cnn_bf), np.asarray(ref_cnn),
                               rtol=5e-2, atol=5e-2)

    print("KERNEL_OK")
</pallas_src>

<mosaic_0001>
module attributes {stable_mosaic.version = 11 : i64} {
  func.func @linear_head_kernel(%arg0: i32, %arg1: memref<2x128xf32, #tpu.memory_space<vmem>>, %arg2: memref<128x128xf32, #tpu.memory_space<vmem>>, %arg3: memref<1x128xf32, #tpu.memory_space<vmem>>, %arg4: memref<128x128xf32, #tpu.memory_space<vmem>>, %arg5: memref<1x128xf32, #tpu.memory_space<vmem>>, %arg6: memref<2x128xf32, #tpu.memory_space<vmem>>) attributes {dimension_semantics = [#tpu.dimension_semantics<parallel>], iteration_bounds = array<i64: 1>, scalar_prefetch = 0 : i64, scratch_operands = 0 : i64, tpu.core_type = #tpu.core_type<tc>, window_params = [{transform_indices = @transform_0, window_bounds = array<i64: 2, 128>}, {pipeline_mode = #tpu.pipeline_mode<synchronous>, transform_indices = @transform_1, window_bounds = array<i64: 128, 128>}, {pipeline_mode = #tpu.pipeline_mode<synchronous>, transform_indices = @transform_2, window_bounds = array<i64: 1, 128>}, {pipeline_mode = #tpu.pipeline_mode<synchronous>, transform_indices = @transform_3, window_bounds = array<i64: 128, 128>}, {pipeline_mode = #tpu.pipeline_mode<synchronous>, transform_indices = @transform_4, window_bounds = array<i64: 1, 128>}, {transform_indices = @transform_5, window_bounds = array<i64: 2, 128>}]} {
    %c0 = arith.constant 0 : index
    %c0_0 = arith.constant 0 : index
    %0 = vector.load %arg1[%c0, %c0_0] : memref<2x128xf32, #tpu.memory_space<vmem>>, vector<2x128xf32>
    %c0_1 = arith.constant 0 : index
    %c0_2 = arith.constant 0 : index
    %1 = vector.load %arg2[%c0_1, %c0_2] : memref<128x128xf32, #tpu.memory_space<vmem>>, vector<128x128xf32>
    %cst = arith.constant dense<0.000000e+00> : vector<2x128xf32>
    %2 = tpu.matmul %0, %1, %cst {dimension_numbers = #tpu.dot_dimension_numbers<[1], [0], [0], [1], [0, 0, 1, 1], [], []>} : vector<2x128xf32>, vector<128x128xf32>, vector<2x128xf32> -> vector<2x128xf32>
    %c0_3 = arith.constant 0 : index
    %c0_4 = arith.constant 0 : index
    %3 = vector.load %arg3[%c0_3, %c0_4] : memref<1x128xf32, #tpu.memory_space<vmem>>, vector<1x128xf32>
    %4 = vector.broadcast %3 : vector<1x128xf32> to vector<2x128xf32>
    %5 = arith.addf %2, %4 : vector<2x128xf32>
    %6 = math.tanh %5 : vector<2x128xf32>
    %c0_5 = arith.constant 0 : index
    %c0_6 = arith.constant 0 : index
    %7 = vector.load %arg4[%c0_5, %c0_6] : memref<128x128xf32, #tpu.memory_space<vmem>>, vector<128x128xf32>
    %cst_7 = arith.constant dense<0.000000e+00> : vector<2x128xf32>
    %8 = tpu.matmul %6, %7, %cst_7 {dimension_numbers = #tpu.dot_dimension_numbers<[1], [0], [0], [1], [0, 0, 1, 1], [], []>} : vector<2x128xf32>, vector<128x128xf32>, vector<2x128xf32> -> vector<2x128xf32>
    %c0_8 = arith.constant 0 : index
    %c0_9 = arith.constant 0 : index
    %9 = vector.load %arg5[%c0_8, %c0_9] : memref<1x128xf32, #tpu.memory_space<vmem>>, vector<1x128xf32>
    %10 = vector.broadcast %9 : vector<1x128xf32> to vector<2x128xf32>
    %11 = arith.addf %8, %10 : vector<2x128xf32>
    %c0_10 = arith.constant 0 : index
    %c0_11 = arith.constant 0 : index
    %12 = vector.load %arg6[%c0_10, %c0_11] : memref<2x128xf32, #tpu.memory_space<vmem>>, vector<2x128xf32>
    tpu.vector_store %arg6[%c0_10, %c0_11], %11 {strides = array<i32>} : memref<2x128xf32, #tpu.memory_space<vmem>>, vector<2x128xf32>,
    return
  }
  func.func @transform_0(%arg0: i32) -> (i32, i32) {
    %c0_i32 = arith.constant 0 : i32
    %c0_i32_0 = arith.constant 0 : i32
    return %arg0, %c0_i32 : i32, i32
  }
  func.func @transform_1(%arg0: i32) -> (i32, i32) {
    %c0_i32 = arith.constant 0 : i32
    %c0_i32_0 = arith.constant 0 : i32
    %c0_i32_1 = arith.constant 0 : i32
    return %c0_i32, %c0_i32_0 : i32, i32
  }
  func.func @transform_2(%arg0: i32) -> (i32, i32) {
    %c0_i32 = arith.constant 0 : i32
    %c0_i32_0 = arith.constant 0 : i32
    %c0_i32_1 = arith.constant 0 : i32
    return %c0_i32, %c0_i32_0 : i32, i32
  }
  func.func @transform_3(%arg0: i32) -> (i32, i32) {
    %c0_i32 = arith.constant 0 : i32
    %c0_i32_0 = arith.constant 0 : i32
    %c0_i32_1 = arith.constant 0 : i32
    return %c0_i32, %c0_i32_0 : i32, i32
  }
  func.func @transform_4(%arg0: i32) -> (i32, i32) {
    %c0_i32 = arith.constant 0 : i32
    %c0_i32_0 = arith.constant 0 : i32
    %c0_i32_1 = arith.constant 0 : i32
    return %c0_i32, %c0_i32_0 : i32, i32
  }
  func.func @transform_5(%arg0: i32) -> (i32, i32) {
    %c0_i32 = arith.constant 0 : i32
    %c0_i32_0 = arith.constant 0 : i32
    return %arg0, %c0_i32 : i32, i32
  }
}

</mosaic_0001>

<llo_original>
// kernel: tpu_custom_call.1
$region0: #{tpu_custom_call.1}
  #allocation0 [shape = 'u32[]', space=smem, size = 0x4, offset = 0x4, fixed_abs, tag = 'smem constant byte address 0x4 - core index']
  #allocation1 [shape = 'u32[144,128]{1,0:T(1,128)}', space=vmem, size = 0x12000, scoped, tag = 'internal scratch']
  %s0 = inlined_call_operand.hbm [shape: f32[2,128], index: 0, kind: input, shape index: {}]
  %s1 = inlined_call_operand.hbm [shape: f32[128,128], index: 1, kind: input, shape index: {}]
  %s2 = inlined_call_operand.hbm [shape: f32[1,128], index: 2, kind: input, shape index: {}]
  %s3 = inlined_call_operand.hbm [shape: f32[128,128], index: 3, kind: input, shape index: {}]
  %s4 = inlined_call_operand.hbm [shape: f32[1,128], index: 4, kind: input, shape index: {}]
  %s5 = inlined_call_operand.hbm [shape: f32[2,128], index: 5, kind: output, shape index: {}]
  %s6 = sld [smem:[#allocation0]]
  $region50: #{tpu_custom_call.1} parent=0
    _
  %s8 = ssub.s32 1, %s6
  %s9 = scalar_select 0, %s8, %s6
  $region1: #{tpu_custom_call.1} parent=0
    #allocation2 [shape = 'u8[1024]{0}', space=vmem, size = 0x400, scoped, tag = 'input window, operand 0, single buffered']
    #allocation3 [shape = 's32[1]{0}', space=sflag, size = 0x4, scoped, tag = 'scoped memory for tpu_custom_call.1']
    #allocation4 [shape = 's32[1]{0}', space=sflag, size = 0x4, scoped, tag = 'scoped memory for tpu_custom_call.1']
    #allocation5 [shape = 'u8[65536]{0}', space=vmem, size = 0x10000, scoped, tag = 'input window, operand 1, single buffered']
    #allocation6 [shape = 's32[1]{0}', space=sflag, size = 0x4, scoped, tag = 'scoped memory for tpu_custom_call.1']
    #allocation7 [shape = 'u8[512]{0}', space=vmem, size = 0x400, scoped, tag = 'input window, operand 2, single buffered']
    #allocation8 [shape = 'u8[65536]{0}', space=vmem, size = 0x10000, scoped, tag = 'input window, operand 3, single buffered']
    #allocation9 [shape = 's32[1]{0}', space=sflag, size = 0x4, scoped, tag = 'scoped memory for tpu_custom_call.1']
    #allocation10 [shape = 'u8[512]{0}', space=vmem, size = 0x400, scoped, tag = 'input window, operand 4, single buffered']
    #allocation11 [shape = 'u8[1024]{0}', space=vmem, size = 0x400, scoped, tag = 'output window, operand 0, single buffered']
    %10 = vsyncpa [#allocation3], 0
    %11 = vsyncpa [#allocation6], 0
    %12 = vsyncpa [#allocation9], 0
    %13 = vsyncpa [#allocation4], 0
    // Predicated region
    $region2: #{tpu_custom_call.1} parent=1 // pred_check
      _
    $region3: #{tpu_custom_call.1} parent=1 // pred_check_branch
      %15 = sbr.rel (0) target = $region5
    $region4: #{tpu_custom_call.1} parent=1 // pred_region
      %s17 = ssub.s32 32, 32
      %18 = vsyncadd [#allocation3], %s17
      %s20 = sshll.u32 [#allocation2], 4
      %s21 = int_to_ptr.vmem [resolvable:$true] %s20
      %23 = dma.hbm_to_vmem [thread:$0]  %s0, 32, %s21, [#allocation3]
    $region5: #{tpu_custom_call.1} parent=1 // pred_fallthru
      _
    // Predicated region
    $region6: #{tpu_custom_call.1} parent=1 // pred_check
      _
    $region7: #{tpu_custom_call.1} parent=1 // pred_check_branch
      %25 = sbr.rel (0) target = $region9
    $region8: #{tpu_custom_call.1} parent=1 // pred_region
      %s27 = ssub.s32 2048, 2048
      %28 = vsyncadd [#allocation6], %s27
      %s29 = sshll.u32 [#allocation5], 4
      %s30 = int_to_ptr.vmem [resolvable:$true] %s29
      %35 = dma.hbm_to_vmem [thread:$0]  %s1, 2048, %s30, [#allocation6], 128, 128, 8
    $region9: #{tpu_custom_call.1} parent=1 // pred_fallthru
      _
    // Predicated region
    $region10: #{tpu_custom_call.1} parent=1 // pred_check
      _
    $region11: #{tpu_custom_call.1} parent=1 // pred_check_branch
      %37 = sbr.rel (0) target = $region13
    $region12: #{tpu_custom_call.1} parent=1 // pred_region
      %s39 = ssub.s32 16, 16
      %40 = vsyncadd [#allocation6], %s39
      %s42 = sshll.u32 [#allocation7], 4
      %s43 = int_to_ptr.vmem [resolvable:$true] %s42
      %45 = dma.hbm_to_vmem [thread:$0]  %s2, 16, %s43, [#allocation6]
    $region13: #{tpu_custom_call.1} parent=1 // pred_fallthru
      _
    // Predicated region
    $region14: #{tpu_custom_call.1} parent=1 // pred_check
      _
    $region15: #{tpu_custom_call.1} parent=1 // pred_check_branch
      %47 = sbr.rel (0) target = $region17
    $region16: #{tpu_custom_call.1} parent=1 // pred_region
      %s49 = ssub.s32 2048, 2048
      %50 = vsyncadd [#allocation9], %s49
      %s51 = sshll.u32 [#allocation8], 4
      %s52 = int_to_ptr.vmem [resolvable:$true] %s51
      %57 = dma.hbm_to_vmem [thread:$0]  %s3, 2048, %s52, [#allocation9], 128, 128, 8
    $region17: #{tpu_custom_call.1} parent=1 // pred_fallthru
      _
    // Predicated region
    $region18: #{tpu_custom_call.1} parent=1 // pred_check
      _
    $region19: #{tpu_custom_call.1} parent=1 // pred_check_branch
      %59 = sbr.rel (0) target = $region21
    $region20: #{tpu_custom_call.1} parent=1 // pred_region
      %s61 = ssub.s32 16, 16
      %62 = vsyncadd [#allocation9], %s61
      %s64 = sshll.u32 [#allocation10], 4
      %s65 = int_to_ptr.vmem [resolvable:$true] %s64
      %67 = dma.hbm_to_vmem [thread:$0]  %s4, 16, %s65, [#allocation9]
    $region21: #{tpu_custom_call.1} parent=1 // pred_fallthru
      _
    // Predicated region
    $region22: #{tpu_custom_call.1} parent=1 // pred_check
      _
    $region23: #{tpu_custom_call.1} parent=1 // pred_check_branch
      %69 = sbr.rel (0) target = $region25
    $region24: #{tpu_custom_call.1} parent=1 // pred_region
      %70 = dma.done [#allocation3], 32
    $region25: #{tpu_custom_call.1} parent=1 // pred_fallthru
      _
    // Predicated region
    $region26: #{tpu_custom_call.1} parent=1 // pred_check
      _
    $region27: #{tpu_custom_call.1} parent=1 // pred_check_branch
      %72 = sbr.rel (0) target = $region29
    $region28: #{tpu_custom_call.1} parent=1 // pred_region
      %73 = dma.done [#allocation6], 2048
    $region29: #{tpu_custom_call.1} parent=1 // pred_fallthru
      _
    // Predicated region
    $region30: #{tpu_custom_call.1} parent=1 // pred_check
      _
    $region31: #{tpu_custom_call.1} parent=1 // pred_check_branch
      %75 = sbr.rel (0) target = $region33
    $region32: #{tpu_custom_call.1} parent=1 // pred_region
      %76 = dma.done [#allocation6], 16
    $region33: #{tpu_custom_call.1} parent=1 // pred_fallthru
      _
    // Predicated region
    $region34: #{tpu_custom_call.1} parent=1 // pred_check
      _
    $region35: #{tpu_custom_call.1} parent=1 // pred_check_branch
      %78 = sbr.rel (0) target = $region37
    $region36: #{tpu_custom_call.1} parent=1 // pred_region
      %79 = dma.done [#allocation9], 2048
    $region37: #{tpu_custom_call.1} parent=1 // pred_fallthru
      _
    // Predicated region
    $region38: #{tpu_custom_call.1} parent=1 // pred_check
      _
    $region39: #{tpu_custom_call.1} parent=1 // pred_check_branch
      %81 = sbr.rel (0) target = $region41
    $region40: #{tpu_custom_call.1} parent=1 // pred_region
      %82 = dma.done [#allocation9], 16
    $region41: #{tpu_custom_call.1} parent=1 // pred_fallthru
      _
    %v83 = vld [vmem:[#allocation2] sm:$0x3]
    %v84 = vld [vmem:[#allocation5] sm:$0xff]
    %v85 = vld [vmem:[#allocation5 + $0x8] sm:$0xff]
    %v86 = vld [vmem:[#allocation5 + $0x10] sm:$0xff]
    %v87 = vld [vmem:[#allocation5 + $0x18] sm:$0xff]
    %v88 = vld [vmem:[#allocation5 + $0x20] sm:$0xff]
    %v89 = vld [vmem:[#allocation5 + $0x28] sm:$0xff]
    %v90 = vld [vmem:[#allocation5 + $0x30] sm:$0xff]
    %v91 = vld [vmem:[#allocation5 + $0x38] sm:$0xff]
    %v92 = vld [vmem:[#allocation5 + $0x40] sm:$0xff]
    %v93 = vld [vmem:[#allocation5 + $0x48] sm:$0xff]
    %v94 = vld [vmem:[#allocation5 + $0x50] sm:$0xff]
    %v95 = vld [vmem:[#allocation5 + $0x58] sm:$0xff]
    %v96 = vld [vmem:[#allocation5 + $0x60] sm:$0xff]
    %v97 = vld [vmem:[#allocation5 + $0x68] sm:$0xff]
    %v98 = vld [vmem:[#allocation5 + $0x70] sm:$0xff]
    %v99 = vld [vmem:[#allocation5 + $0x78] sm:$0xff]
    %v100 = vld [vmem:[#allocation7] sm:$0x1]
    %v102 = vlaneseq
    %v103 = vshrl.u32 %v102, 7
    %v104 = vsub.s32 0, %v103
    %v105 = vrot.slane %v100, %v104
    %107 = vmatprep.subr.mxu0 0.0
    %108 = vmatpush1.msra.mxu0 %v84
    %109 = vmatprep.subr.mxu0 0.0
    %110 = vmatpush1.msra.mxu0 %v85
    %111 = vmatprep.subr.mxu0 0.0
    %112 = vmatpush1.msra.mxu0 %v86
    %113 = vmatprep.subr.mxu0 0.0
    %114 = vmatpush1.msra.mxu0 %v87
    %115 = vmatprep.subr.mxu0 0.0
    %116 = vmatpush1.msra.mxu0 %v88
    %117 = vmatprep.subr.mxu0 0.0
    %118 = vmatpush1.msra.mxu0 %v89
    %119 = vmatprep.subr.mxu0 0.0
    %120 = vmatpush1.msra.mxu0 %v90
    %121 = vmatprep.subr.mxu0 0.0
    %122 = vmatpush1.msra.mxu0 %v91
    %123 = vmatprep.subr.mxu0 0.0
    %124 = vmatpush1.msra.mxu0 %v92
    %125 = vmatprep.subr.mxu0 0.0
    %126 = vmatpush1.msra.mxu0 %v93
    %127 = vmatprep.subr.mxu0 0.0
    %128 = vmatpush1.msra.mxu0 %v94
    %129 = vmatprep.subr.mxu0 0.0
    %130 = vmatpush1.msra.mxu0 %v95
    %131 = vmatprep.subr.mxu0 0.0
    %132 = vmatpush1.msra.mxu0 %v96
    %133 = vmatprep.subr.mxu0 0.0
    %134 = vmatpush1.msra.mxu0 %v97
    %135 = vmatprep.subr.mxu0 0.0
    %136 = vmatpush1.msra.mxu0 %v98
    %137 = vmatprep.subr.mxu0 0.0
    %138 = vmatpush1.msra.mxu0 %v99
    %139 = vmatprep.subr.mxu0 0.0
    %140 = vmatpush1.msra.mxu0 0.0
    %141 = vmatprep.subr.mxu0 0.0
    %142 = vmatpush1.msra.mxu0 0.0
    %143 = vmatprep.subr.mxu0 0.0
    %144 = vmatpush1.msra.mxu0 0.0
    %145 = vmatprep.subr.mxu0 0.0
    %146 = vmatpush1.msra.mxu0 0.0
    %147 = vmatprep.subr.mxu0 0.0
    %148 = vmatpush1.msra.mxu0 0.0
    %149 = vmatprep.subr.mxu0 0.0
    %150 = vmatpush1.msra.mxu0 0.0
    %151 = vmatprep.subr.mxu0 0.0
    %152 = vmatpush1.msra.mxu0 0.0
    %153 = vmatprep.subr.mxu0 0.0
    %154 = vmatpush1.msra.mxu0 0.0
    %155 = vmatprep.subr.mxu0 0.0
    %156 = vmatpush1.msra.mxu0 0.0
    %157 = vmatprep.subr.mxu0 0.0
    %158 = vmatpush1.msra.mxu0 0.0
    %159 = vmatprep.subr.mxu0 0.0
    %160 = vmatpush1.msra.mxu0 0.0
    %161 = vmatprep.subr.mxu0 0.0
    %162 = vmatpush1.msra.mxu0 0.0
    %163 = vmatprep.subr.mxu0 0.0
    %164 = vmatpush1.msra.mxu0 0.0
    %165 = vmatprep.subr.mxu0 0.0
    %166 = vmatpush1.msra.mxu0 0.0
    %167 = vmatprep.subr.mxu0 0.0
    %168 = vmatpush1.msra.mxu0 0.0
    %169 = vmatprep.subr.mxu0 0.0
    %170 = vmatpush1.msra.mxu0 0.0
    %171 = vmatprep.mubr.f32.mxu0 0.0
    %172 = vmatmul.mubr.f32.gmra.mrb[0].mxu0 %v83
    %v173 = vpop.f32.mrb[0].mxu0
    %v174 = vadd.f32 %v105, %v173
    %v175 = vpop.f32.mrb[0].mxu0
    %176 = vdwg.mxu0
    %v177 = vtanh.pop %v174
    %v178 = vld [vmem:[#allocation8] sm:$0xff]
    %v179 = vld [vmem:[#allocation8 + $0x8] sm:$0xff]
    %v180 = vld [vmem:[#allocation8 + $0x10] sm:$0xff]
    %v181 = vld [vmem:[#allocation8 + $0x18] sm:$0xff]
    %v182 = vld [vmem:[#allocation8 + $0x20] sm:$0xff]
    %v183 = vld [vmem:[#allocation8 + $0x28] sm:$0xff]
    %v184 = vld [vmem:[#allocation8 + $0x30] sm:$0xff]
    %v185 = vld [vmem:[#allocation8 + $0x38] sm:$0xff]
    %v186 = vld [vmem:[#allocation8 + $0x40] sm:$0xff]
    %v187 = vld [vmem:[#allocation8 + $0x48] sm:$0xff]
    %v188 = vld [vmem:[#allocation8 + $0x50] sm:$0xff]
    %v189 = vld [vmem:[#allocation8 + $0x58] sm:$0xff]
    %v190 = vld [vmem:[#allocation8 + $0x60] sm:$0xff]
    %v191 = vld [vmem:[#allocation8 + $0x68] sm:$0xff]
    %v192 = vld [vmem:[#allocation8 + $0x70] sm:$0xff]
    %v193 = vld [vmem:[#allocation8 + $0x78] sm:$0xff]
    %v194 = vld [vmem:[#allocation10] sm:$0x1]
    %v196 = vlaneseq
    %v197 = vshrl.u32 %v196, 7
    %v198 = vsub.s32 0, %v197
    %v199 = vrot.slane %v194, %v198
    %201 = vmatprep.subr.mxu0 0.0
    %202 = vmatpush1.msra.mxu0 %v178
    %203 = vmatprep.subr.mxu0 0.0
    %204 = vmatpush1.msra.mxu0 %v179
    %205 = vmatprep.subr.mxu0 0.0
    %206 = vmatpush1.msra.mxu0 %v180
    %207 = vmatprep.subr.mxu0 0.0
    %208 = vmatpush1.msra.mxu0 %v181
    %209 = vmatprep.subr.mxu0 0.0
    %210 = vmatpush1.msra.mxu0 %v182
    %211 = vmatprep.subr.mxu0 0.0
    %212 = vmatpush1.msra.mxu0 %v183
    %213 = vmatprep.subr.mxu0 0.0
    %214 = vmatpush1.msra.mxu0 %v184
    %215 = vmatprep.subr.mxu0 0.0
    %216 = vmatpush1.msra.mxu0 %v185
    %217 = vmatprep.subr.mxu0 0.0
    %218 = vmatpush1.msra.mxu0 %v186
    %219 = vmatprep.subr.mxu0 0.0
    %220 = vmatpush1.msra.mxu0 %v187
    %221 = vmatprep.subr.mxu0 0.0
    %222 = vmatpush1.msra.mxu0 %v188
    %223 = vmatprep.subr.mxu0 0.0
    %224 = vmatpush1.msra.mxu0 %v189
    %225 = vmatprep.subr.mxu0 0.0
    %226 = vmatpush1.msra.mxu0 %v190
    %227 = vmatprep.subr.mxu0 0.0
    %228 = vmatpush1.msra.mxu0 %v191
    %229 = vmatprep.subr.mxu0 0.0
    %230 = vmatpush1.msra.mxu0 %v192
    %231 = vmatprep.subr.mxu0 0.0
    %232 = vmatpush1.msra.mxu0 %v193
    %233 = vmatprep.subr.mxu0 0.0
    %234 = vmatpush1.msra.mxu0 0.0
    %235 = vmatprep.subr.mxu0 0.0
    %236 = vmatpush1.msra.mxu0 0.0
    %237 = vmatprep.subr.mxu0 0.0
    %238 = vmatpush1.msra.mxu0 0.0
    %239 = vmatprep.subr.mxu0 0.0
    %240 = vmatpush1.msra.mxu0 0.0
    %241 = vmatprep.subr.mxu0 0.0
    %242 = vmatpush1.msra.mxu0 0.0
    %243 = vmatprep.subr.mxu0 0.0
    %244 = vmatpush1.msra.mxu0 0.0
    %245 = vmatprep.subr.mxu0 0.0
    %246 = vmatpush1.msra.mxu0 0.0
    %247 = vmatprep.subr.mxu0 0.0
    %248 = vmatpush1.msra.mxu0 0.0
    %249 = vmatprep.subr.mxu0 0.0
    %250 = vmatpush1.msra.mxu0 0.0
    %251 = vmatprep.subr.mxu0 0.0
    %252 = vmatpush1.msra.mxu0 0.0
    %253 = vmatprep.subr.mxu0 0.0
    %254 = vmatpush1.msra.mxu0 0.0
    %255 = vmatprep.subr.mxu0 0.0
    %256 = vmatpush1.msra.mxu0 0.0
    %257 = vmatprep.subr.mxu0 0.0
    %258 = vmatpush1.msra.mxu0 0.0
    %259 = vmatprep.subr.mxu0 0.0
    %260 = vmatpush1.msra.mxu0 0.0
    %261 = vmatprep.subr.mxu0 0.0
    %262 = vmatpush1.msra.mxu0 0.0
    %263 = vmatprep.subr.mxu0 0.0
    %264 = vmatpush1.msra.mxu0 0.0
    %265 = vmatprep.mubr.f32.mxu0 0.0
    %266 = vmatmul.mubr.f32.gmra.mrb[0].mxu0 %v177
    %v267 = vpop.f32.mrb[0].mxu0
    %v268 = vadd.f32 %v199, %v267
    %v269 = vpop.f32.mrb[0].mxu0
    %270 = vdwg.mxu0
    %271 = vst [vmem:[#allocation11] sm:$0x3] %v268
    // Predicated region
    $region42: #{tpu_custom_call.1} parent=1 // pred_check
      _
    $region43: #{tpu_custom_call.1} parent=1 // pred_check_branch
      %273 = sbr.rel (0) target = $region45
    $region44: #{tpu_custom_call.1} parent=1 // pred_region
      %s275 = ssub.s32 32, 32
      %276 = vsyncadd [#allocation4], %s275
      %s278 = sshll.u32 [#allocation11], 4
      %s279 = int_to_ptr.vmem [resolvable:$true] %s278
      %281 = dma.vmem_to_hbm [thread:$0]  %s279, 32, %s5, [#allocation4]
    $region45: #{tpu_custom_call.1} parent=1 // pred_fallthru
      _
    // Predicated region
    $region46: #{tpu_custom_call.1} parent=1 // pred_check
      _
    $region47: #{tpu_custom_call.1} parent=1 // pred_check_branch
      %283 = sbr.rel (0) target = $region49
    $region48: #{tpu_custom_call.1} parent=1 // pred_region
      %284 = dma.done [#allocation4], 32
    $region49: #{tpu_custom_call.1} parent=1 // pred_fallthru
      _
    %285 = vsyncpa [#allocation3], 1
    %286 = vsyncpa [#allocation6], 1
    %287 = vsyncpa [#allocation9], 1
    %288 = vsyncpa [#allocation4], 1

</llo_original>
